<compile_context>
chip_gen: v7x
topology: tpu7x:2x2x1
jax: 0.10.0
libtpu: 0.0.40
codegen_flags: <defaults>
</compile_context>

<pallas_src>
import functools

import jax
import jax.numpy as jnp
from jax import lax
from jax.experimental import pallas as pl
from jax.experimental.pallas import tpu as pltpu

# --- Config (mirrors the PyTorch Config) ---
VOCAB_SIZE = 113
BLOCK_SIZE = 8      # T
N_EMBED = 64        # C
N_HEADS = 4
HEAD_SIZE = N_EMBED // N_HEADS  # 16
DROPOUT = 0.1       # identity at eval time

NEG_INF = -1e30     # finite sentinel: exp(x + NEG_INF - m) == 0, never NaN


def head_kernel(x_ref, wq_ref, wk_ref, wv_ref, bias_ref, o_ref,
                *, batch, seq, head_size):
    """x_ref: (B*T, C) bf16; w*_ref: (C, H) bf16 (wq pre-scaled by 1/sqrt(C));
    bias_ref: (T, T) f32 additive causal mask; o_ref: (B, T, H) f32."""
    B, T, H = batch, seq, head_size

    x = x_ref[...]                                                   # (B*T, C)

    # Projections: three clean matmuls against whole weight buffers.  Weight
    # operands are bf16, accumulation is f32 on the MXU.  No lane slicing.
    q = jnp.dot(x, wq_ref[...], preferred_element_type=jnp.float32)  # (B*T, H)
    k = jnp.dot(x, wk_ref[...], preferred_element_type=jnp.float32)
    v = jnp.dot(x, wv_ref[...], preferred_element_type=jnp.float32)

    # Split the batch dim back out; T==8 lands exactly on a sublane-tile
    # boundary so this reshape is layout-trivial.
    q3 = q.reshape(B, T, H)
    k3 = k.reshape(B, T, H)
    v3 = v.reshape(B, T, H)

    # Batched scores: contract the head dim, batch over B.  q is already
    # scaled by 1/sqrt(C) (folded into the query weights on the host).
    wei = lax.dot_general(q3, k3, (((2,), (2,)), ((0,), (0,))),
                          preferred_element_type=jnp.float32)        # (B, T, T)

    # Additive causal bias (0 on/below the diagonal, -1e30 above); broadcast
    # over the batch dim.  Replaces a per-element vsel with a vadd.
    wei = wei + bias_ref[...]

    # Numerically stable softmax in f32; exact reciprocal (EUP slot is idle
    # for 16 values, and this keeps bit-level agreement with the reference).
    m = jnp.max(wei, axis=-1, keepdims=True)
    e = jnp.exp(wei - m)
    denom = jnp.sum(e, axis=-1, keepdims=True)
    p = e * pl.reciprocal(denom, approx=False)

    # dropout(p) == p in eval mode.
    # TODO(synk): training-mode dropout on `p`.

    # Batched PV matmul: contract over the key/time dim, batch over B.
    out = lax.dot_general(p, v3, (((2,), (1,)), ((0,), (0,))),
                          preferred_element_type=jnp.float32)        # (B, T, H)

    # Single full-tile store.
    o_ref[...] = out.astype(o_ref.dtype)


def head_forward(x, w_key, w_query, w_value):
    """x: (B, T, C) float32. w_*: (C, head_size) (already transposed)."""
    B, T, C = x.shape
    H = w_key.shape[1]
    scale = C ** -0.5   # per the PyTorch code: scores scaled by 1/sqrt(C)

    # Host-side prep (free / fused by XLA):
    #   * flatten x to (B*T, C) so the projections are one clean 2-D matmul
    #   * fold the 1/sqrt(C) scale into the query weights
    #   * cast MXU operands to bf16 (accumulation stays f32 in-kernel)
    #   * precompute the additive causal-mask bias once
    x2d = x.reshape(B * T, C).astype(jnp.bfloat16)
    wq = (w_query * scale).astype(jnp.bfloat16)
    wk = w_key.astype(jnp.bfloat16)
    wv = w_value.astype(jnp.bfloat16)
    causal = jnp.tril(jnp.ones((T, T), dtype=bool))
    mask_bias = jnp.where(causal, 0.0, NEG_INF).astype(jnp.float32)

    kernel = functools.partial(head_kernel, batch=B, seq=T, head_size=H)

    vmem = pl.BlockSpec(memory_space=pltpu.MemorySpace.VMEM)
    out = pl.pallas_call(
        kernel,
        out_shape=jax.ShapeDtypeStruct((B, T, H), jnp.float32),
        # Gridless call: whole arrays live in VMEM, no grid-pipeline overhead.
        in_specs=[vmem, vmem, vmem, vmem, vmem],
        out_specs=vmem,
    )(x2d, wq, wk, wv, mask_bias)

    return out


if __name__ == "__main__":
    key = jax.random.PRNGKey(0)
    k_x, k_k, k_q, k_v = jax.random.split(key, 4)

    B, T, C, H = 2, BLOCK_SIZE, N_EMBED, HEAD_SIZE

    x = jax.random.normal(k_x, (B, T, C), dtype=jnp.float32)

    # nn.Linear(C, H, bias=False) weight has shape (H, C); we store the
    # transpose (C, H) so the kernel computes x @ W directly.
    scale = 1.0 / (C ** 0.5)  # ~ PyTorch default uniform init scale
    w_key_t = jax.random.uniform(k_k, (C, H), jnp.float32, -scale, scale)
    w_query_t = jax.random.uniform(k_q, (C, H), jnp.float32, -scale, scale)
    w_value_t = jax.random.uniform(k_v, (C, H), jnp.float32, -scale, scale)

    out = head_forward(x, w_key_t, w_query_t, w_value_t)
    out = jax.block_until_ready(out)

    # sanity: shape and finiteness
    assert out.shape == (B, T, H)
    assert bool(jnp.all(jnp.isfinite(out)))

    # cross-check against a pure-JAX f32 reference (original, unscaled weights)
    def ref(x, wk, wq, wv):
        k = x @ wk
        q = x @ wq
        v = x @ wv
        wei = (q @ jnp.swapaxes(k, -2, -1)) / (C ** 0.5)
        mask = jnp.tril(jnp.ones((T, T), dtype=bool))
        wei = jnp.where(mask, wei, -jnp.inf)
        wei = jax.nn.softmax(wei, axis=-1)
        return wei @ v

    expected = ref(x, w_key_t, w_query_t, w_value_t)
    # tolerance accounts for bf16 projection operands (f32 accumulation)
    assert bool(jnp.allclose(out, expected, atol=1e-2, rtol=1e-2))

    print("KERNEL_OK")
</pallas_src>

<mosaic_0001>
module attributes {stable_mosaic.version = 11 : i64} {
  func.func @head_kernel(%arg0: memref<16x64xbf16, #tpu.memory_space<vmem>>, %arg1: memref<64x16xbf16, #tpu.memory_space<vmem>>, %arg2: memref<64x16xbf16, #tpu.memory_space<vmem>>, %arg3: memref<64x16xbf16, #tpu.memory_space<vmem>>, %arg4: memref<8x8xf32, #tpu.memory_space<vmem>>, %arg5: memref<2x8x16xf32, #tpu.memory_space<vmem>>) attributes {dimension_semantics = [], scalar_prefetch = 0 : i64, scratch_operands = 0 : i64, tpu.core_type = #tpu.core_type<tc>} {
    %c0 = arith.constant 0 : index
    %c0_0 = arith.constant 0 : index
    %0 = vector.load %arg0[%c0, %c0_0] : memref<16x64xbf16, #tpu.memory_space<vmem>>, vector<16x64xbf16>
    %c0_1 = arith.constant 0 : index
    %c0_2 = arith.constant 0 : index
    %1 = vector.load %arg1[%c0_1, %c0_2] : memref<64x16xbf16, #tpu.memory_space<vmem>>, vector<64x16xbf16>
    %cst = arith.constant dense<0.000000e+00> : vector<16x16xf32>
    %2 = tpu.matmul %0, %1, %cst {dimension_numbers = #tpu.dot_dimension_numbers<[1], [0], [0], [1], [0, 0, 1, 1], [], []>} : vector<16x64xbf16>, vector<64x16xbf16>, vector<16x16xf32> -> vector<16x16xf32>
    %c0_3 = arith.constant 0 : index
    %c0_4 = arith.constant 0 : index
    %3 = vector.load %arg2[%c0_3, %c0_4] : memref<64x16xbf16, #tpu.memory_space<vmem>>, vector<64x16xbf16>
    %cst_5 = arith.constant dense<0.000000e+00> : vector<16x16xf32>
    %4 = tpu.matmul %0, %3, %cst_5 {dimension_numbers = #tpu.dot_dimension_numbers<[1], [0], [0], [1], [0, 0, 1, 1], [], []>} : vector<16x64xbf16>, vector<64x16xbf16>, vector<16x16xf32> -> vector<16x16xf32>
    %c0_6 = arith.constant 0 : index
    %c0_7 = arith.constant 0 : index
    %5 = vector.load %arg3[%c0_6, %c0_7] : memref<64x16xbf16, #tpu.memory_space<vmem>>, vector<64x16xbf16>
    %cst_8 = arith.constant dense<0.000000e+00> : vector<16x16xf32>
    %6 = tpu.matmul %0, %5, %cst_8 {dimension_numbers = #tpu.dot_dimension_numbers<[1], [0], [0], [1], [0, 0, 1, 1], [], []>} : vector<16x64xbf16>, vector<64x16xbf16>, vector<16x16xf32> -> vector<16x16xf32>
    %7 = vector.shape_cast %2 : vector<16x16xf32> to vector<2x8x16xf32>
    %8 = vector.shape_cast %4 : vector<16x16xf32> to vector<2x8x16xf32>
    %9 = vector.shape_cast %6 : vector<16x16xf32> to vector<2x8x16xf32>
    %cst_9 = arith.constant dense<0.000000e+00> : vector<2x8x8xf32>
    %10 = tpu.matmul %7, %8, %cst_9 {dimension_numbers = #tpu.dot_dimension_numbers<[2], [2], [1], [1], [0, 0, 0, 1, 1, 1], [0], [0]>} : vector<2x8x16xf32>, vector<2x8x16xf32>, vector<2x8x8xf32> -> vector<2x8x8xf32>
    %c0_10 = arith.constant 0 : index
    %c0_11 = arith.constant 0 : index
    %11 = vector.load %arg4[%c0_10, %c0_11] : memref<8x8xf32, #tpu.memory_space<vmem>>, vector<8x8xf32>
    %12 = vector.shape_cast %11 : vector<8x8xf32> to vector<1x8x8xf32>
    %13 = vector.broadcast %12 : vector<1x8x8xf32> to vector<2x8x8xf32>
    %14 = arith.addf %10, %13 : vector<2x8x8xf32>
    %cst_12 = arith.constant dense<0xFF800000> : vector<2x8xf32>
    %15 = vector.multi_reduction <maximumf>, %14, %cst_12 [2] : vector<2x8x8xf32> to vector<2x8xf32>
    %16 = vector.shape_cast %15 : vector<2x8xf32> to vector<2x8x1xf32>
    %17 = vector.broadcast %16 : vector<2x8x1xf32> to vector<2x8x8xf32>
    %18 = arith.subf %14, %17 : vector<2x8x8xf32>
    %19 = math.exp %18 : vector<2x8x8xf32>
    %cst_13 = arith.constant dense<0.000000e+00> : vector<2x8xf32>
    %20 = vector.multi_reduction <add>, %19, %cst_13 [2] : vector<2x8x8xf32> to vector<2x8xf32>
    %21 = vector.shape_cast %20 : vector<2x8xf32> to vector<2x8x1xf32>
    %22 = tpu.reciprocal %21 : vector<2x8x1xf32> -> vector<2x8x1xf32>
    %23 = vector.broadcast %22 : vector<2x8x1xf32> to vector<2x8x8xf32>
    %24 = arith.mulf %19, %23 : vector<2x8x8xf32>
    %cst_14 = arith.constant dense<0.000000e+00> : vector<2x8x16xf32>
    %25 = tpu.matmul %24, %9, %cst_14 {dimension_numbers = #tpu.dot_dimension_numbers<[2], [1], [1], [2], [0, 0, 0, 1, 1, 2], [0], [0]>} : vector<2x8x8xf32>, vector<2x8x16xf32>, vector<2x8x16xf32> -> vector<2x8x16xf32>
    %c0_15 = arith.constant 0 : index
    %c0_16 = arith.constant 0 : index
    %c0_17 = arith.constant 0 : index
    %26 = vector.load %arg5[%c0_15, %c0_16, %c0_17] : memref<2x8x16xf32, #tpu.memory_space<vmem>>, vector<2x8x16xf32>
    tpu.vector_store %arg5[%c0_15, %c0_16, %c0_17], %25 {strides = array<i32>} : memref<2x8x16xf32, #tpu.memory_space<vmem>>, vector<2x8x16xf32>,
    return
  }
}

</mosaic_0001>

<llo_original>
// kernel: tpu_custom_call.1
$region0: #{tpu_custom_call.1}
  #allocation0 [shape = 'u32[]', space=smem, size = 0x4, offset = 0x4, fixed_abs, tag = 'smem constant byte address 0x4 - core index']
  #allocation1 [shape = 'u32[144,128]{1,0:T(1,128)}', space=vmem, size = 0x12000, scoped, tag = 'internal scratch']
  %s0 = inlined_call_operand.vmem [shape: bf16[16,64], index: 0, kind: input, shape index: {}]
  %s1 = inlined_call_operand.vmem [shape: bf16[64,16], index: 1, kind: input, shape index: {}]
  %s2 = inlined_call_operand.vmem [shape: bf16[64,16], index: 2, kind: input, shape index: {}]
  %s3 = inlined_call_operand.vmem [shape: bf16[64,16], index: 3, kind: input, shape index: {}]
  %s4 = inlined_call_operand.vmem [shape: f32[8,8], index: 4, kind: input, shape index: {}]
  %s5 = inlined_call_operand.hbm [shape: f32[2,8,16], index: 5, kind: output, shape index: {}]
  %s6 = sld [smem:[#allocation0]]
  $region30: #{tpu_custom_call.1} parent=0
    _
  %s8 = ssub.s32 1, %s6
  %s9 = scalar_select 0, %s8, %s6
  $region1: #{tpu_custom_call.1} parent=0
    #allocation2 [shape = 'u8[8192]{0}', space=vmem, size = 0x2000, scoped, tag = 'output window, operand 0, single buffered']
    #allocation3 [shape = 's32[1]{0}', space=sflag, size = 0x4, scoped, tag = 'scoped memory for tpu_custom_call.1']
    %10 = vsyncpa [#allocation3], 0
    // Predicated region
    $region2: #{tpu_custom_call.1} parent=1 // pred_check
      _
    $region3: #{tpu_custom_call.1} parent=1 // pred_check_branch
      %12 = sbr.rel (0) target = $region5
    $region4: #{tpu_custom_call.1} parent=1 // pred_region
      _
    $region5: #{tpu_custom_call.1} parent=1 // pred_fallthru
      _
    // Predicated region
    $region6: #{tpu_custom_call.1} parent=1 // pred_check
      _
    $region7: #{tpu_custom_call.1} parent=1 // pred_check_branch
      %14 = sbr.rel (0) target = $region9
    $region8: #{tpu_custom_call.1} parent=1 // pred_region
      _
    $region9: #{tpu_custom_call.1} parent=1 // pred_fallthru
      _
    // Predicated region
    $region10: #{tpu_custom_call.1} parent=1 // pred_check
      _
    $region11: #{tpu_custom_call.1} parent=1 // pred_check_branch
      %16 = sbr.rel (0) target = $region13
    $region12: #{tpu_custom_call.1} parent=1 // pred_region
      _
    $region13: #{tpu_custom_call.1} parent=1 // pred_fallthru
      _
    // Predicated region
    $region14: #{tpu_custom_call.1} parent=1 // pred_check
      _
    $region15: #{tpu_custom_call.1} parent=1 // pred_check_branch
      %18 = sbr.rel (0) target = $region17
    $region16: #{tpu_custom_call.1} parent=1 // pred_region
      _
    $region17: #{tpu_custom_call.1} parent=1 // pred_fallthru
      _
    // Predicated region
    $region18: #{tpu_custom_call.1} parent=1 // pred_check
      _
    $region19: #{tpu_custom_call.1} parent=1 // pred_check_branch
      %20 = sbr.rel (0) target = $region21
    $region20: #{tpu_custom_call.1} parent=1 // pred_region
      _
    $region21: #{tpu_custom_call.1} parent=1 // pred_fallthru
      _
    %v22 = vld [vmem:[%s0] sm:$0xf]
    %v23 = vld [vmem:[%s0 + $0x4] sm:$0xf]
    %v24 = vld [vmem:[%s1] sm:$0xf]
    %v25 = vld [vmem:[%s1 + $0x4] sm:$0xf]
    %v26 = vld [vmem:[%s1 + $0x8] sm:$0xf]
    %v27 = vld [vmem:[%s1 + $0xc] sm:$0xf]
    %v28 = vld [vmem:[%s1 + $0x10] sm:$0xf]
    %v29 = vld [vmem:[%s1 + $0x14] sm:$0xf]
    %v30 = vld [vmem:[%s1 + $0x18] sm:$0xf]
    %v31 = vld [vmem:[%s1 + $0x1c] sm:$0xf]
    %v34 = vunpack.c.l.b16 %v22
    %v35 = vunpack.c.l.b16 %v23
    %v36 = vpack.c.b16 %v35, %v34
    %v45 = vunpack.c.l.b16 %v24
    %v46 = vunpack.c.l.b16 %v25
    %v47 = vunpack.c.l.b16 %v26
    %v48 = vunpack.c.l.b16 %v27
    %v49 = vunpack.c.l.b16 %v28
    %v50 = vunpack.c.l.b16 %v29
    %v51 = vunpack.c.l.b16 %v30
    %v52 = vunpack.c.l.b16 %v31
    %v53 = vpack.c.b16 %v46, %v45
    %v54 = vpack.c.b16 %v48, %v47
    %v55 = vpack.c.b16 %v50, %v49
    %v56 = vpack.c.b16 %v52, %v51
    %vm61 = vcmask 523264
    %v63 = vsel %vm61, %v36, 0
    %65 = vmatprep.subr.bf16.mxu0 0
    %66 = vmatpush1.bf16.msra.mxu0 %v53
    %67 = vmatprep.subr.bf16.mxu0 0
    %68 = vmatpush1.bf16.msra.mxu0 %v54
    %69 = vmatprep.subr.bf16.mxu0 0
    %70 = vmatpush1.bf16.msra.mxu0 %v55
    %71 = vmatprep.subr.bf16.mxu0 0
    %72 = vmatpush1.bf16.msra.mxu0 %v56
    %73 = vmatprep.subr.bf16.mxu0 0
    %74 = vmatpush1.bf16.msra.mxu0 0
    %75 = vmatprep.subr.bf16.mxu0 0
    %76 = vmatpush1.bf16.msra.mxu0 0
    %77 = vmatprep.subr.bf16.mxu0 0
    %78 = vmatpush1.bf16.msra.mxu0 0
    %79 = vmatprep.subr.bf16.mxu0 0
    %80 = vmatpush1.bf16.msra.mxu0 0
    %81 = vmatprep.subr.bf16.mxu0 0
    %82 = vmatpush1.bf16.msra.mxu0 0
    %83 = vmatprep.subr.bf16.mxu0 0
    %84 = vmatpush1.bf16.msra.mxu0 0
    %85 = vmatprep.subr.bf16.mxu0 0
    %86 = vmatpush1.bf16.msra.mxu0 0
    %87 = vmatprep.subr.bf16.mxu0 0
    %88 = vmatpush1.bf16.msra.mxu0 0
    %89 = vmatprep.subr.bf16.mxu0 0
    %90 = vmatpush1.bf16.msra.mxu0 0
    %91 = vmatprep.subr.bf16.mxu0 0
    %92 = vmatpush1.bf16.msra.mxu0 0
    %93 = vmatprep.subr.bf16.mxu0 0
    %94 = vmatpush1.bf16.msra.mxu0 0
    %95 = vmatprep.subr.bf16.mxu0 0
    %96 = vmatpush1.bf16.msra.mxu0 0
    %97 = vmatprep.mubr.bf16.mxu0 0
    %98 = vmatmul.mubr.bf16.gmra.mrb[0].mxu0 %v63
    %v99 = vpop.f32.mrb[0].mxu0
    %v100 = vadd.f32 0.0, %v99
    %v101 = vpop.f32.mrb[0].mxu0
    %v102 = vpop.f32.mrb[0].mxu0
    %v103 = vadd.f32 0.0, %v102
    %v104 = vpop.f32.mrb[0].mxu0
    %105 = vdwg.mxu0
    %v106 = vld [vmem:[%s2] sm:$0xf]
    %v107 = vld [vmem:[%s2 + $0x4] sm:$0xf]
    %v108 = vld [vmem:[%s2 + $0x8] sm:$0xf]
    %v109 = vld [vmem:[%s2 + $0xc] sm:$0xf]
    %v110 = vld [vmem:[%s2 + $0x10] sm:$0xf]
    %v111 = vld [vmem:[%s2 + $0x14] sm:$0xf]
    %v112 = vld [vmem:[%s2 + $0x18] sm:$0xf]
    %v113 = vld [vmem:[%s2 + $0x1c] sm:$0xf]
    %v122 = vunpack.c.l.b16 %v106
    %v123 = vunpack.c.l.b16 %v107
    %v124 = vunpack.c.l.b16 %v108
    %v125 = vunpack.c.l.b16 %v109
    %v126 = vunpack.c.l.b16 %v110
    %v127 = vunpack.c.l.b16 %v111
    %v128 = vunpack.c.l.b16 %v112
    %v129 = vunpack.c.l.b16 %v113
    %v130 = vpack.c.b16 %v123, %v122
    %v131 = vpack.c.b16 %v125, %v124
    %v132 = vpack.c.b16 %v127, %v126
    %v133 = vpack.c.b16 %v129, %v128
    %138 = vmatprep.subr.bf16.mxu0 0
    %139 = vmatpush1.bf16.msra.mxu0 %v130
    %140 = vmatprep.subr.bf16.mxu0 0
    %141 = vmatpush1.bf16.msra.mxu0 %v131
    %142 = vmatprep.subr.bf16.mxu0 0
    %143 = vmatpush1.bf16.msra.mxu0 %v132
    %144 = vmatprep.subr.bf16.mxu0 0
    %145 = vmatpush1.bf16.msra.mxu0 %v133
    %146 = vmatprep.subr.bf16.mxu0 0
    %147 = vmatpush1.bf16.msra.mxu0 0
    %148 = vmatprep.subr.bf16.mxu0 0
    %149 = vmatpush1.bf16.msra.mxu0 0
    %150 = vmatprep.subr.bf16.mxu0 0
    %151 = vmatpush1.bf16.msra.mxu0 0
    %152 = vmatprep.subr.bf16.mxu0 0
    %153 = vmatpush1.bf16.msra.mxu0 0
    %154 = vmatprep.subr.bf16.mxu0 0
    %155 = vmatpush1.bf16.msra.mxu0 0
    %156 = vmatprep.subr.bf16.mxu0 0
    %157 = vmatpush1.bf16.msra.mxu0 0
    %158 = vmatprep.subr.bf16.mxu0 0
    %159 = vmatpush1.bf16.msra.mxu0 0
    %160 = vmatprep.subr.bf16.mxu0 0
    %161 = vmatpush1.bf16.msra.mxu0 0
    %162 = vmatprep.subr.bf16.mxu0 0
    %163 = vmatpush1.bf16.msra.mxu0 0
    %164 = vmatprep.subr.bf16.mxu0 0
    %165 = vmatpush1.bf16.msra.mxu0 0
    %166 = vmatprep.subr.bf16.mxu0 0
    %167 = vmatpush1.bf16.msra.mxu0 0
    %168 = vmatprep.subr.bf16.mxu0 0
    %169 = vmatpush1.bf16.msra.mxu0 0
    %170 = vmatprep.mubr.bf16.mxu0 0
    %171 = vmatmul.mubr.bf16.gmra.mrb[0].mxu0 %v63
    %v172 = vpop.f32.mrb[0].mxu0
    %v173 = vadd.f32 0.0, %v172
    %v174 = vpop.f32.mrb[0].mxu0
    %v175 = vpop.f32.mrb[0].mxu0
    %v176 = vadd.f32 0.0, %v175
    %v177 = vpop.f32.mrb[0].mxu0
    %178 = vdwg.mxu0
    %v179 = vld [vmem:[%s3] sm:$0xf]
    %v180 = vld [vmem:[%s3 + $0x4] sm:$0xf]
    %v181 = vld [vmem:[%s3 + $0x8] sm:$0xf]
    %v182 = vld [vmem:[%s3 + $0xc] sm:$0xf]
    %v183 = vld [vmem:[%s3 + $0x10] sm:$0xf]
    %v184 = vld [vmem:[%s3 + $0x14] sm:$0xf]
    %v185 = vld [vmem:[%s3 + $0x18] sm:$0xf]
    %v186 = vld [vmem:[%s3 + $0x1c] sm:$0xf]
    %v195 = vunpack.c.l.b16 %v179
    %v196 = vunpack.c.l.b16 %v180
    %v197 = vunpack.c.l.b16 %v181
    %v198 = vunpack.c.l.b16 %v182
    %v199 = vunpack.c.l.b16 %v183
    %v200 = vunpack.c.l.b16 %v184
    %v201 = vunpack.c.l.b16 %v185
    %v202 = vunpack.c.l.b16 %v186
    %v203 = vpack.c.b16 %v196, %v195
    %v204 = vpack.c.b16 %v198, %v197
    %v205 = vpack.c.b16 %v200, %v199
    %v206 = vpack.c.b16 %v202, %v201
    %211 = vmatprep.subr.bf16.mxu0 0
    %212 = vmatpush1.bf16.msra.mxu0 %v203
    %213 = vmatprep.subr.bf16.mxu0 0
    %214 = vmatpush1.bf16.msra.mxu0 %v204
    %215 = vmatprep.subr.bf16.mxu0 0
    %216 = vmatpush1.bf16.msra.mxu0 %v205
    %217 = vmatprep.subr.bf16.mxu0 0
    %218 = vmatpush1.bf16.msra.mxu0 %v206
    %219 = vmatprep.subr.bf16.mxu0 0
    %220 = vmatpush1.bf16.msra.mxu0 0
    %221 = vmatprep.subr.bf16.mxu0 0
    %222 = vmatpush1.bf16.msra.mxu0 0
    %223 = vmatprep.subr.bf16.mxu0 0
    %224 = vmatpush1.bf16.msra.mxu0 0
    %225 = vmatprep.subr.bf16.mxu0 0
    %226 = vmatpush1.bf16.msra.mxu0 0
    %227 = vmatprep.subr.bf16.mxu0 0
    %228 = vmatpush1.bf16.msra.mxu0 0
    %229 = vmatprep.subr.bf16.mxu0 0
    %230 = vmatpush1.bf16.msra.mxu0 0
    %231 = vmatprep.subr.bf16.mxu0 0
    %232 = vmatpush1.bf16.msra.mxu0 0
    %233 = vmatprep.subr.bf16.mxu0 0
    %234 = vmatpush1.bf16.msra.mxu0 0
    %235 = vmatprep.subr.bf16.mxu0 0
    %236 = vmatpush1.bf16.msra.mxu0 0
    %237 = vmatprep.subr.bf16.mxu0 0
    %238 = vmatpush1.bf16.msra.mxu0 0
    %239 = vmatprep.subr.bf16.mxu0 0
    %240 = vmatpush1.bf16.msra.mxu0 0
    %241 = vmatprep.subr.bf16.mxu0 0
    %242 = vmatpush1.bf16.msra.mxu0 0
    %243 = vmatprep.mubr.bf16.mxu0 0
    %244 = vmatmul.mubr.bf16.gmra.mrb[0].mxu0 %v63
    %v245 = vpop.f32.mrb[0].mxu0
    %v246 = vadd.f32 0.0, %v245
    %v247 = vpop.f32.mrb[0].mxu0
    %v248 = vpop.f32.mrb[0].mxu0
    %v249 = vadd.f32 0.0, %v248
    %v250 = vpop.f32.mrb[0].mxu0
    %251 = vdwg.mxu0
    %v252 = vld [vmem:[%s4] sm:$0xff]
    %vm253 = vcmask 130048
    %v255 = vsel %vm253, %v100, 0
    %v258 = vsel %vm253, %v173, 0
    %260 = vmatprep.subr.mxu0 0.0
    %261 = vmatpush1.xpose.msra.mxu0 %v258
    %262 = vmatprep.subr.mxu0 0.0
    %263 = vmatpush1.xpose.msra.mxu0 0.0
    %264 = vmatprep.subr.mxu0 0.0
    %265 = vmatpush1.xpose.msra.mxu0 0.0
    %266 = vmatprep.subr.mxu0 0.0
    %267 = vmatpush1.xpose.msra.mxu0 0.0
    %268 = vmatprep.subr.mxu0 0.0
    %269 = vmatpush1.xpose.msra.mxu0 0.0
    %270 = vmatprep.subr.mxu0 0.0
    %271 = vmatpush1.xpose.msra.mxu0 0.0
    %272 = vmatprep.subr.mxu0 0.0
    %273 = vmatpush1.xpose.msra.mxu0 0.0
    %274 = vmatprep.subr.mxu0 0.0
    %275 = vmatpush1.xpose.msra.mxu0 0.0
    %276 = vmatprep.subr.mxu0 0.0
    %277 = vmatpush1.xpose.msra.mxu0 0.0
    %278 = vmatprep.subr.mxu0 0.0
    %279 = vmatpush1.xpose.msra.mxu0 0.0
    %280 = vmatprep.subr.mxu0 0.0
    %281 = vmatpush1.xpose.msra.mxu0 0.0
    %282 = vmatprep.subr.mxu0 0.0
    %283 = vmatpush1.xpose.msra.mxu0 0.0
    %284 = vmatprep.subr.mxu0 0.0
    %285 = vmatpush1.xpose.msra.mxu0 0.0
    %286 = vmatprep.subr.mxu0 0.0
    %287 = vmatpush1.xpose.msra.mxu0 0.0
    %288 = vmatprep.subr.mxu0 0.0
    %289 = vmatpush1.xpose.msra.mxu0 0.0
    %290 = vmatprep.subr.mxu0 0.0
    %291 = vmatpush1.xpose.msra.mxu0 0.0
    %292 = vmatprep.subr.mxu0 0.0
    %293 = vmatpush1.xpose.msra.mxu0 0.0
    %294 = vmatprep.subr.mxu0 0.0
    %295 = vmatpush1.xpose.msra.mxu0 0.0
    %296 = vmatprep.subr.mxu0 0.0
    %297 = vmatpush1.xpose.msra.mxu0 0.0
    %298 = vmatprep.subr.mxu0 0.0
    %299 = vmatpush1.xpose.msra.mxu0 0.0
    %300 = vmatprep.subr.mxu0 0.0
    %301 = vmatpush1.xpose.msra.mxu0 0.0
    %302 = vmatprep.subr.mxu0 0.0
    %303 = vmatpush1.xpose.msra.mxu0 0.0
    %304 = vmatprep.subr.mxu0 0.0
    %305 = vmatpush1.xpose.msra.mxu0 0.0
    %306 = vmatprep.subr.mxu0 0.0
    %307 = vmatpush1.xpose.msra.mxu0 0.0
    %308 = vmatprep.subr.mxu0 0.0
    %309 = vmatpush1.xpose.msra.mxu0 0.0
    %310 = vmatprep.subr.mxu0 0.0
    %311 = vmatpush1.xpose.msra.mxu0 0.0
    %312 = vmatprep.subr.mxu0 0.0
    %313 = vmatpush1.xpose.msra.mxu0 0.0
    %314 = vmatprep.subr.mxu0 0.0
    %315 = vmatpush1.xpose.msra.mxu0 0.0
    %316 = vmatprep.subr.mxu0 0.0
    %317 = vmatpush1.xpose.msra.mxu0 0.0
    %318 = vmatprep.subr.mxu0 0.0
    %319 = vmatpush1.xpose.msra.mxu0 0.0
    %320 = vmatprep.subr.mxu0 0.0
    %321 = vmatpush1.xpose.msra.mxu0 0.0
    %322 = vmatprep.subr.mxu0 0.0
    %323 = vmatpush1.xpose.msra.mxu0 0.0
    %324 = vmatprep.mubr.f32.mxu0 0.0
    %325 = vmatmul.mubr.f32.gmra.mrb[0].mxu0 %v255
    %v326 = vpop.f32.mrb[0].mxu0
    %v327 = vadd.f32 %v252, %v326
    %v328 = vpop.f32.mrb[0].mxu0
    %329 = vdwg.mxu0
    %v331 = vsel %vm253, %v103, 0
    %v334 = vsel %vm253, %v176, 0
    %336 = vmatprep.subr.mxu0 0.0
    %337 = vmatpush1.xpose.msra.mxu0 %v334
    %338 = vmatprep.subr.mxu0 0.0
    %339 = vmatpush1.xpose.msra.mxu0 0.0
    %340 = vmatprep.subr.mxu0 0.0
    %341 = vmatpush1.xpose.msra.mxu0 0.0
    %342 = vmatprep.subr.mxu0 0.0
    %343 = vmatpush1.xpose.msra.mxu0 0.0
    %344 = vmatprep.subr.mxu0 0.0
    %345 = vmatpush1.xpose.msra.mxu0 0.0
    %346 = vmatprep.subr.mxu0 0.0
    %347 = vmatpush1.xpose.msra.mxu0 0.0
    %348 = vmatprep.subr.mxu0 0.0
    %349 = vmatpush1.xpose.msra.mxu0 0.0
    %350 = vmatprep.subr.mxu0 0.0
    %351 = vmatpush1.xpose.msra.mxu0 0.0
    %352 = vmatprep.subr.mxu0 0.0
    %353 = vmatpush1.xpose.msra.mxu0 0.0
    %354 = vmatprep.subr.mxu0 0.0
    %355 = vmatpush1.xpose.msra.mxu0 0.0
    %356 = vmatprep.subr.mxu0 0.0
    %357 = vmatpush1.xpose.msra.mxu0 0.0
    %358 = vmatprep.subr.mxu0 0.0
    %359 = vmatpush1.xpose.msra.mxu0 0.0
    %360 = vmatprep.subr.mxu0 0.0
    %361 = vmatpush1.xpose.msra.mxu0 0.0
    %362 = vmatprep.subr.mxu0 0.0
    %363 = vmatpush1.xpose.msra.mxu0 0.0
    %364 = vmatprep.subr.mxu0 0.0
    %365 = vmatpush1.xpose.msra.mxu0 0.0
    %366 = vmatprep.subr.mxu0 0.0
    %367 = vmatpush1.xpose.msra.mxu0 0.0
    %368 = vmatprep.subr.mxu0 0.0
    %369 = vmatpush1.xpose.msra.mxu0 0.0
    %370 = vmatprep.subr.mxu0 0.0
    %371 = vmatpush1.xpose.msra.mxu0 0.0
    %372 = vmatprep.subr.mxu0 0.0
    %373 = vmatpush1.xpose.msra.mxu0 0.0
    %374 = vmatprep.subr.mxu0 0.0
    %375 = vmatpush1.xpose.msra.mxu0 0.0
    %376 = vmatprep.subr.mxu0 0.0
    %377 = vmatpush1.xpose.msra.mxu0 0.0
    %378 = vmatprep.subr.mxu0 0.0
    %379 = vmatpush1.xpose.msra.mxu0 0.0
    %380 = vmatprep.subr.mxu0 0.0
    %381 = vmatpush1.xpose.msra.mxu0 0.0
    %382 = vmatprep.subr.mxu0 0.0
    %383 = vmatpush1.xpose.msra.mxu0 0.0
    %384 = vmatprep.subr.mxu0 0.0
    %385 = vmatpush1.xpose.msra.mxu0 0.0
    %386 = vmatprep.subr.mxu0 0.0
    %387 = vmatpush1.xpose.msra.mxu0 0.0
    %388 = vmatprep.subr.mxu0 0.0
    %389 = vmatpush1.xpose.msra.mxu0 0.0
    %390 = vmatprep.subr.mxu0 0.0
    %391 = vmatpush1.xpose.msra.mxu0 0.0
    %392 = vmatprep.subr.mxu0 0.0
    %393 = vmatpush1.xpose.msra.mxu0 0.0
    %394 = vmatprep.subr.mxu0 0.0
    %395 = vmatpush1.xpose.msra.mxu0 0.0
    %396 = vmatprep.subr.mxu0 0.0
    %397 = vmatpush1.xpose.msra.mxu0 0.0
    %398 = vmatprep.subr.mxu0 0.0
    %399 = vmatpush1.xpose.msra.mxu0 0.0
    %400 = vmatprep.mubr.f32.mxu0 0.0
    %401 = vmatmul.mubr.f32.gmra.mrb[0].mxu0 %v331
    %v402 = vpop.f32.mrb[0].mxu0
    %v403 = vadd.f32 %v252, %v402
    %v404 = vpop.f32.mrb[0].mxu0
    %405 = vdwg.mxu0
    %vm406 = vcmask 64512
    %v407 = vsel %vm406, %v327, -inf
    %408 = vmax.xlane.f32.xlu0 %v407
    %v409 = vpop.xlane.xlu0 %408
    %v410 = vsel %vm406, %v403, -inf
    %411 = vmax.xlane.f32.xlu0 %v410
    %v412 = vpop.xlane.xlu0 %411
    %v413 = vsub.f32 %v327, %v409
    %v414 = vsub.f32 %v403, %v412
    %v415 = vmul.f32 %v413, 1.442695
    %v416 = vpow.pop %v415
    %v417 = vmul.f32 %v414, 1.442695
    %v418 = vpow.pop %v417
    %v419 = vsel %vm406, %v416, 0.0
    %420 = vadd.xlane.f32.xlu0 %v419
    %v421 = vpop.xlane.xlu0 %420
    %v422 = vsel %vm406, %v418, 0.0
    %423 = vadd.xlane.f32.xlu0 %v422
    %v424 = vpop.xlane.xlu0 %423
    %v425 = vrcp.pop %v421
    %v426 = vrcp.pop %v424
    %v427 = vmul.f32 %v416, %v425
    %v428 = vmul.f32 %v418, %v426
    %v430 = vsel %vm406, %v427, 0
    %432 = vmatprep.subr.mxu0 0.0
    %433 = vmatpush1.msra.mxu0 %v246
    %434 = vmatprep.subr.mxu0 0.0
    %435 = vmatpush1.msra.mxu0 0.0
    %436 = vmatprep.subr.mxu0 0.0
    %437 = vmatpush1.msra.mxu0 0.0
    %438 = vmatprep.subr.mxu0 0.0
    %439 = vmatpush1.msra.mxu0 0.0
    %440 = vmatprep.subr.mxu0 0.0
    %441 = vmatpush1.msra.mxu0 0.0
    %442 = vmatprep.subr.mxu0 0.0
    %443 = vmatpush1.msra.mxu0 0.0
    %444 = vmatprep.subr.mxu0 0.0
    %445 = vmatpush1.msra.mxu0 0.0
    %446 = vmatprep.subr.mxu0 0.0
    %447 = vmatpush1.msra.mxu0 0.0
    %448 = vmatprep.subr.mxu0 0.0
    %449 = vmatpush1.msra.mxu0 0.0
    %450 = vmatprep.subr.mxu0 0.0
    %451 = vmatpush1.msra.mxu0 0.0
    %452 = vmatprep.subr.mxu0 0.0
    %453 = vmatpush1.msra.mxu0 0.0
    %454 = vmatprep.subr.mxu0 0.0
    %455 = vmatpush1.msra.mxu0 0.0
    %456 = vmatprep.subr.mxu0 0.0
    %457 = vmatpush1.msra.mxu0 0.0
    %458 = vmatprep.subr.mxu0 0.0
    %459 = vmatpush1.msra.mxu0 0.0
    %460 = vmatprep.subr.mxu0 0.0
    %461 = vmatpush1.msra.mxu0 0.0
    %462 = vmatprep.subr.mxu0 0.0
    %463 = vmatpush1.msra.mxu0 0.0
    %464 = vmatprep.subr.mxu0 0.0
    %465 = vmatpush1.msra.mxu0 0.0
    %466 = vmatprep.subr.mxu0 0.0
    %467 = vmatpush1.msra.mxu0 0.0
    %468 = vmatprep.subr.mxu0 0.0
    %469 = vmatpush1.msra.mxu0 0.0
    %470 = vmatprep.subr.mxu0 0.0
    %471 = vmatpush1.msra.mxu0 0.0
    %472 = vmatprep.subr.mxu0 0.0
    %473 = vmatpush1.msra.mxu0 0.0
    %474 = vmatprep.subr.mxu0 0.0
    %475 = vmatpush1.msra.mxu0 0.0
    %476 = vmatprep.subr.mxu0 0.0
    %477 = vmatpush1.msra.mxu0 0.0
    %478 = vmatprep.subr.mxu0 0.0
    %479 = vmatpush1.msra.mxu0 0.0
    %480 = vmatprep.subr.mxu0 0.0
    %481 = vmatpush1.msra.mxu0 0.0
    %482 = vmatprep.subr.mxu0 0.0
    %483 = vmatpush1.msra.mxu0 0.0
    %484 = vmatprep.subr.mxu0 0.0
    %485 = vmatpush1.msra.mxu0 0.0
    %486 = vmatprep.subr.mxu0 0.0
    %487 = vmatpush1.msra.mxu0 0.0
    %488 = vmatprep.subr.mxu0 0.0
    %489 = vmatpush1.msra.mxu0 0.0
    %490 = vmatprep.subr.mxu0 0.0
    %491 = vmatpush1.msra.mxu0 0.0
    %492 = vmatprep.subr.mxu0 0.0
    %493 = vmatpush1.msra.mxu0 0.0
    %494 = vmatprep.subr.mxu0 0.0
    %495 = vmatpush1.msra.mxu0 0.0
    %496 = vmatprep.mubr.f32.mxu0 0.0
    %497 = vmatmul.mubr.f32.gmra.mrb[0].mxu0 %v430
    %v498 = vpop.f32.mrb[0].mxu0
    %v499 = vadd.f32 0.0, %v498
    %v500 = vpop.f32.mrb[0].mxu0
    %501 = vdwg.mxu0
    %v503 = vsel %vm406, %v428, 0
    %505 = vmatprep.subr.mxu0 0.0
    %506 = vmatpush1.msra.mxu0 %v249
    %507 = vmatprep.subr.mxu0 0.0
    %508 = vmatpush1.msra.mxu0 0.0
    %509 = vmatprep.subr.mxu0 0.0
    %510 = vmatpush1.msra.mxu0 0.0
    %511 = vmatprep.subr.mxu0 0.0
    %512 = vmatpush1.msra.mxu0 0.0
    %513 = vmatprep.subr.mxu0 0.0
    %514 = vmatpush1.msra.mxu0 0.0
    %515 = vmatprep.subr.mxu0 0.0
    %516 = vmatpush1.msra.mxu0 0.0
    %517 = vmatprep.subr.mxu0 0.0
    %518 = vmatpush1.msra.mxu0 0.0
    %519 = vmatprep.subr.mxu0 0.0
    %520 = vmatpush1.msra.mxu0 0.0
    %521 = vmatprep.subr.mxu0 0.0
    %522 = vmatpush1.msra.mxu0 0.0
    %523 = vmatprep.subr.mxu0 0.0
    %524 = vmatpush1.msra.mxu0 0.0
    %525 = vmatprep.subr.mxu0 0.0
    %526 = vmatpush1.msra.mxu0 0.0
    %527 = vmatprep.subr.mxu0 0.0
    %528 = vmatpush1.msra.mxu0 0.0
    %529 = vmatprep.subr.mxu0 0.0
    %530 = vmatpush1.msra.mxu0 0.0
    %531 = vmatprep.subr.mxu0 0.0
    %532 = vmatpush1.msra.mxu0 0.0
    %533 = vmatprep.subr.mxu0 0.0
    %534 = vmatpush1.msra.mxu0 0.0
    %535 = vmatprep.subr.mxu0 0.0
    %536 = vmatpush1.msra.mxu0 0.0
    %537 = vmatprep.subr.mxu0 0.0
    %538 = vmatpush1.msra.mxu0 0.0
    %539 = vmatprep.subr.mxu0 0.0
    %540 = vmatpush1.msra.mxu0 0.0
    %541 = vmatprep.subr.mxu0 0.0
    %542 = vmatpush1.msra.mxu0 0.0
    %543 = vmatprep.subr.mxu0 0.0
    %544 = vmatpush1.msra.mxu0 0.0
    %545 = vmatprep.subr.mxu0 0.0
    %546 = vmatpush1.msra.mxu0 0.0
    %547 = vmatprep.subr.mxu0 0.0
    %548 = vmatpush1.msra.mxu0 0.0
    %549 = vmatprep.subr.mxu0 0.0
    %550 = vmatpush1.msra.mxu0 0.0
    %551 = vmatprep.subr.mxu0 0.0
    %552 = vmatpush1.msra.mxu0 0.0
    %553 = vmatprep.subr.mxu0 0.0
    %554 = vmatpush1.msra.mxu0 0.0
    %555 = vmatprep.subr.mxu0 0.0
    %556 = vmatpush1.msra.mxu0 0.0
    %557 = vmatprep.subr.mxu0 0.0
    %558 = vmatpush1.msra.mxu0 0.0
    %559 = vmatprep.subr.mxu0 0.0
    %560 = vmatpush1.msra.mxu0 0.0
    %561 = vmatprep.subr.mxu0 0.0
    %562 = vmatpush1.msra.mxu0 0.0
    %563 = vmatprep.subr.mxu0 0.0
    %564 = vmatpush1.msra.mxu0 0.0
    %565 = vmatprep.subr.mxu0 0.0
    %566 = vmatpush1.msra.mxu0 0.0
    %567 = vmatprep.subr.mxu0 0.0
    %568 = vmatpush1.msra.mxu0 0.0
    %569 = vmatprep.mubr.f32.mxu0 0.0
    %570 = vmatmul.mubr.f32.gmra.mrb[0].mxu0 %v503
    %v571 = vpop.f32.mrb[0].mxu0
    %v572 = vadd.f32 0.0, %v571
    %v573 = vpop.f32.mrb[0].mxu0
    %574 = vdwg.mxu0
    %575 = vst.msk [vmem:[#allocation2] sm:$0xff] %vm253, %v499
    %576 = vst.msk [vmem:[#allocation2 + $0x8] sm:$0xff] %vm253, %v572
    // Predicated region
    $region22: #{tpu_custom_call.1} parent=1 // pred_check
      _
    $region23: #{tpu_custom_call.1} parent=1 // pred_check_branch
      %578 = sbr.rel (0) target = $region25
    $region24: #{tpu_custom_call.1} parent=1 // pred_region
      %s580 = ssub.s32 256, 256
      %581 = vsyncadd [#allocation3], %s580
      %s582 = sshll.u32 [#allocation2], 4
      %s583 = int_to_ptr.vmem [resolvable:$true] %s582
      %588 = dma.vmem_to_hbm [thread:$0]  %s583, 256, %s5, [#allocation3], 128, 128, 8
    $region25: #{tpu_custom_call.1} parent=1 // pred_fallthru
      _
    // Predicated region
    $region26: #{tpu_custom_call.1} parent=1 // pred_check
      _
    $region27: #{tpu_custom_call.1} parent=1 // pred_check_branch
      %590 = sbr.rel (0) target = $region29
    $region28: #{tpu_custom_call.1} parent=1 // pred_region
      %591 = dma.done [#allocation3], 256
    $region29: #{tpu_custom_call.1} parent=1 // pred_fallthru
      _
    %592 = vsyncpa [#allocation3], 1

</llo_original>
